<compile_context>
chip_gen: v7x
topology: tpu7x:2x2x1
jax: 0.10.0
libtpu: 0.0.40
codegen_flags: <defaults>
</compile_context>

<pallas_src>
import functools

import jax
import jax.numpy as jnp
from jax.experimental import pallas as pl
from jax.experimental.pallas import tpu as pltpu


def _overshoot_sigmoid_kernel(x_ref, o_ref, *, scale, eps):
    # Load tile, compute in f32, store in output dtype.
    x = x_ref[...].astype(jnp.float32)
    s = jax.nn.sigmoid(x)           # EUP transcendental
    y = s * scale + eps             # single fma-able VALU op
    o_ref[...] = y.astype(o_ref.dtype)


def overshoot_sigmoid_pallas(x, eps: float = 0.1, *, lane: int = 512, tm_max: int = 1024):
    """Equivalent of torch.sigmoid(x) / (1 - 2*eps) + eps for any input shape."""
    orig_shape = x.shape
    dtype = x.dtype
    total = x.size

    # --- lane-dense 2D re-layout in the wrapper ---------------------------
    rows = -(-total // lane)                       # ceil-div
    # tile rows: multiple of 8, capped at tm_max, but no bigger than needed
    tm = min(tm_max, ((rows + 7) // 8) * 8)
    tm = max(tm, 8)
    rows_padded = -(-rows // tm) * tm              # pad rows to a whole tile
    padded_total = rows_padded * lane

    flat = x.reshape(-1)
    if padded_total != total:
        flat = jnp.pad(flat, (0, padded_total - total))
    x2 = flat.reshape(rows_padded, lane)

    scale = 1.0 / (1.0 - 2.0 * eps)                # constant, fma-able
    kernel = functools.partial(_overshoot_sigmoid_kernel, scale=scale, eps=eps)

    grid = (rows_padded // tm,)

    out2 = pl.pallas_call(
        kernel,
        out_shape=jax.ShapeDtypeStruct((rows_padded, lane), dtype),
        grid_spec=pltpu.PrefetchScalarGridSpec(
            num_scalar_prefetch=0,
            grid=grid,
            in_specs=[pl.BlockSpec((tm, lane), lambda i: (i, 0))],
            out_specs=pl.BlockSpec((tm, lane), lambda i: (i, 0)),
        ),
        compiler_params=pltpu.CompilerParams(
            dimension_semantics=("parallel",),     # shards across TCs on v7x
        ),
    )(x2)

    out_flat = out2.reshape(-1)
    if padded_total != total:
        out_flat = out_flat[:total]
    return out_flat.reshape(orig_shape)


if __name__ == "__main__":
    key = jax.random.PRNGKey(0)
    x = jax.random.normal(key, (2, 4, 16, 16), dtype=jnp.float32)

    out = overshoot_sigmoid_pallas(x, eps=0.1)
    out = jax.block_until_ready(out)

    # reference check (plain JAX)
    ref = jax.nn.sigmoid(x) / (1.0 - 2.0 * 0.1) + 0.1
    assert out.shape == x.shape and out.dtype == x.dtype
    assert jnp.max(jnp.abs(out - ref)) < 1e-5

    print("KERNEL_OK")
</pallas_src>

<mosaic_0001>
module attributes {stable_mosaic.version = 11 : i64} {
  func.func @_overshoot_sigmoid_kernel(%arg0: i32, %arg1: memref<8x512xf32, #tpu.memory_space<vmem>>, %arg2: memref<8x512xf32, #tpu.memory_space<vmem>>) attributes {dimension_semantics = [#tpu.dimension_semantics<parallel>], iteration_bounds = array<i64: 1>, scalar_prefetch = 0 : i64, scratch_operands = 0 : i64, tpu.core_type = #tpu.core_type<tc>, window_params = [{transform_indices = @transform_0, window_bounds = array<i64: 8, 512>}, {transform_indices = @transform_1, window_bounds = array<i64: 8, 512>}]} {
    %c0 = arith.constant 0 : index
    %c0_0 = arith.constant 0 : index
    %0 = vector.load %arg1[%c0, %c0_0] : memref<8x512xf32, #tpu.memory_space<vmem>>, vector<8x512xf32>
    %1 = arith.negf %0 : vector<8x512xf32>
    %2 = math.exp %1 : vector<8x512xf32>
    %cst = arith.constant 1.000000e+00 : f32
    %3 = vector.broadcast %cst : f32 to vector<8x512xf32>
    %4 = arith.addf %3, %2 : vector<8x512xf32>
    %5 = arith.divf %3, %4 : vector<8x512xf32>
    %cst_1 = arith.constant 1.250000e+00 : f32
    %6 = vector.broadcast %cst_1 : f32 to vector<8x512xf32>
    %7 = arith.mulf %5, %6 : vector<8x512xf32>
    %cst_2 = arith.constant 1.000000e-01 : f32
    %8 = vector.broadcast %cst_2 : f32 to vector<8x512xf32>
    %9 = arith.addf %7, %8 : vector<8x512xf32>
    %c0_3 = arith.constant 0 : index
    %c0_4 = arith.constant 0 : index
    %10 = vector.load %arg2[%c0_3, %c0_4] : memref<8x512xf32, #tpu.memory_space<vmem>>, vector<8x512xf32>
    tpu.vector_store %arg2[%c0_3, %c0_4], %9 {strides = array<i32>} : memref<8x512xf32, #tpu.memory_space<vmem>>, vector<8x512xf32>,
    return
  }
  func.func @transform_0(%arg0: i32) -> (i32, i32) {
    %c0_i32 = arith.constant 0 : i32
    %c0_i32_0 = arith.constant 0 : i32
    return %arg0, %c0_i32 : i32, i32
  }
  func.func @transform_1(%arg0: i32) -> (i32, i32) {
    %c0_i32 = arith.constant 0 : i32
    %c0_i32_0 = arith.constant 0 : i32
    return %arg0, %c0_i32 : i32, i32
  }
}

</mosaic_0001>

<llo_original>
// kernel: tpu_custom_call.1
$region0: #{tpu_custom_call.1}
  #allocation0 [shape = 'u32[]', space=smem, size = 0x4, offset = 0x4, fixed_abs, tag = 'smem constant byte address 0x4 - core index']
  #allocation1 [shape = 'u32[144,128]{1,0:T(1,128)}', space=vmem, size = 0x12000, scoped, tag = 'internal scratch']
  %s0 = inlined_call_operand.hbm [shape: f32[8,512], index: 0, kind: input, shape index: {}]
  %s1 = inlined_call_operand.hbm [shape: f32[8,512], index: 1, kind: output, shape index: {}]
  %s2 = sld [smem:[#allocation0]]
  $region18: #{tpu_custom_call.1} parent=0
    _
  %s4 = ssub.s32 1, %s2
  %s5 = scalar_select 0, %s4, %s2
  $region1: #{tpu_custom_call.1} parent=0
    #allocation2 [shape = 'u8[16384]{0}', space=vmem, size = 0x4000, scoped, tag = 'input window, operand 0, single buffered']
    #allocation3 [shape = 's32[1]{0}', space=sflag, size = 0x4, scoped, tag = 'scoped memory for tpu_custom_call.1']
    #allocation4 [shape = 's32[1]{0}', space=sflag, size = 0x4, scoped, tag = 'scoped memory for tpu_custom_call.1']
    #allocation5 [shape = 'u8[16384]{0}', space=vmem, size = 0x4000, scoped, tag = 'output window, operand 0, single buffered']
    %6 = vsyncpa [#allocation3], 0
    %7 = vsyncpa [#allocation4], 0
    // Predicated region
    $region2: #{tpu_custom_call.1} parent=1 // pred_check
      _
    $region3: #{tpu_custom_call.1} parent=1 // pred_check_branch
      %9 = sbr.rel (0) target = $region5
    $region4: #{tpu_custom_call.1} parent=1 // pred_region
      %s11 = ssub.s32 512, 512
      %12 = vsyncadd [#allocation3], %s11
      %s14 = sshll.u32 [#allocation2], 4
      %s15 = int_to_ptr.vmem [resolvable:$true] %s14
      %17 = dma.hbm_to_vmem [thread:$0]  %s0, 512, %s15, [#allocation3]
    $region5: #{tpu_custom_call.1} parent=1 // pred_fallthru
      _
    // Predicated region
    $region6: #{tpu_custom_call.1} parent=1 // pred_check
      _
    $region7: #{tpu_custom_call.1} parent=1 // pred_check_branch
      %19 = sbr.rel (0) target = $region9
    $region8: #{tpu_custom_call.1} parent=1 // pred_region
      %20 = dma.done [#allocation3], 512
    $region9: #{tpu_custom_call.1} parent=1 // pred_fallthru
      _
    %v21 = vld [vmem:[#allocation2] sm:$0xff]
    %v22 = vld [vmem:[#allocation2 + $0x8] sm:$0xff]
    %v23 = vld [vmem:[#allocation2 + $0x10] sm:$0xff]
    %v24 = vld [vmem:[#allocation2 + $0x18] sm:$0xff]
    %v25 = vxor.u32 %v21, 2147483648
    %v26 = vxor.u32 %v22, 2147483648
    %v27 = vxor.u32 %v23, 2147483648
    %v28 = vxor.u32 %v24, 2147483648
    %v29 = vmul.f32 %v25, 1.442695
    %v30 = vpow.pop %v29
    %v31 = vmul.f32 %v26, 1.442695
    %v32 = vpow.pop %v31
    %v33 = vmul.f32 %v27, 1.442695
    %v34 = vpow.pop %v33
    %v35 = vmul.f32 %v28, 1.442695
    %v36 = vpow.pop %v35
    %v37 = vadd.f32 %v30, 1.0
    %v38 = vadd.f32 %v32, 1.0
    %v39 = vadd.f32 %v34, 1.0
    %v40 = vadd.f32 %v36, 1.0
    %v41 = vrcp.pop %v37
    %v42 = vmul.f32 1.0, %v41
    %v43 = vrcp.pop %v38
    %v44 = vmul.f32 1.0, %v43
    %v45 = vrcp.pop %v39
    %v46 = vmul.f32 1.0, %v45
    %v47 = vrcp.pop %v40
    %v48 = vmul.f32 1.0, %v47
    %v49 = vmul.f32 %v42, 1.25
    %v50 = vmul.f32 %v44, 1.25
    %v51 = vmul.f32 %v46, 1.25
    %v52 = vmul.f32 %v48, 1.25
    %v53 = vadd.f32 %v49, 0.1
    %v54 = vadd.f32 %v50, 0.1
    %v55 = vadd.f32 %v51, 0.1
    %v56 = vadd.f32 %v52, 0.1
    %57 = vst [vmem:[#allocation5] sm:$0xff] %v53
    %58 = vst [vmem:[#allocation5 + $0x8] sm:$0xff] %v54
    %59 = vst [vmem:[#allocation5 + $0x10] sm:$0xff] %v55
    %60 = vst [vmem:[#allocation5 + $0x18] sm:$0xff] %v56
    // Predicated region
    $region10: #{tpu_custom_call.1} parent=1 // pred_check
      _
    $region11: #{tpu_custom_call.1} parent=1 // pred_check_branch
      %62 = sbr.rel (0) target = $region13
    $region12: #{tpu_custom_call.1} parent=1 // pred_region
      %s64 = ssub.s32 512, 512
      %65 = vsyncadd [#allocation4], %s64
      %s67 = sshll.u32 [#allocation5], 4
      %s68 = int_to_ptr.vmem [resolvable:$true] %s67
      %70 = dma.vmem_to_hbm [thread:$0]  %s68, 512, %s1, [#allocation4]
    $region13: #{tpu_custom_call.1} parent=1 // pred_fallthru
      _
    // Predicated region
    $region14: #{tpu_custom_call.1} parent=1 // pred_check
      _
    $region15: #{tpu_custom_call.1} parent=1 // pred_check_branch
      %72 = sbr.rel (0) target = $region17
    $region16: #{tpu_custom_call.1} parent=1 // pred_region
      %73 = dma.done [#allocation4], 512
    $region17: #{tpu_custom_call.1} parent=1 // pred_fallthru
      _
    %74 = vsyncpa [#allocation3], 1
    %75 = vsyncpa [#allocation4], 1

</llo_original>
